<compile_context>
chip_gen: v5e
topology: v5e:2x2
jax: 0.10.0
libtpu: 0.0.40
codegen_flags: <defaults>
</compile_context>

<pallas_src>
import functools

import jax
import jax.numpy as jnp
from jax.experimental import pallas as pl
from jax.experimental.pallas import tpu as pltpu


def _vmem_capacity_bytes():
    try:
        return int(pltpu.get_tpu_info().vmem_capacity_bytes)
    except Exception:
        return 128 * 2**20  # v5e/v6e default


def _choose_plane_tile(num_planes, plane_bytes, align, target_block_bytes):
    """Planes per grid step: aligned to the native sublane tile, sized for
    ~target_block_bytes blocks, and (when there are enough planes) capped so the
    grid has >= 2 steps for megacore sharding on v7x."""
    tp = max(1, target_block_bytes // max(plane_bytes, 1))
    tp = min(tp, num_planes)
    if num_planes > align:
        tp = max(align, (tp // align) * align)
        max_tp = max(align, (((num_planes + 1) // 2) // align) * align)
        tp = min(tp, max_tp)
    else:
        tp = num_planes  # small full extent: legal block shape, single step
    return tp


def _sobel_flat_kernel(img_w, masks_ref, x1_ref, x2_ref,
                       gx1_ref, gy1_ref, gx2_ref, gy2_ref):
    """Sobel-x / Sobel-y on (TP, H*W) blocks of flattened (h, w) planes.

    Separable form (cross-correlation, zero padding):
      a = x[h-1,:] + 2*x[h,:] + x[h+1,:]   -> gx = a[:, w-1] - a[:, w+1]
      b = x[h-1,:] -           x[h+1,:]    -> gy = b[:, w-1] + 2*b[:, w] + b[:, w+1]
    On the flat (h*W + w) lane axis a vertical neighbour is a roll by +/-W and a
    horizontal neighbour is a roll by +/-1; precomputed (1, L) masks zero the
    lanes where the roll wraps or crosses an image-row boundary (== the zero
    padding of Conv2d(padding=1)).
    """
    L = x1_ref.shape[1]
    m = masks_ref[...]                      # (4, L) float32, broadcast on sublanes
    m_up, m_down = m[0:1, :], m[1:2, :]     # h > 0, h < H-1
    m_left, m_right = m[2:3, :], m[3:4, :]  # w > 0, w < W-1

    def sobel_xy(x_ref):
        x = x_ref[...].astype(jnp.float32)
        xu = m_up * pltpu.roll(x, img_w, 1)        # x[h-1, w]
        xd = m_down * pltpu.roll(x, L - img_w, 1)  # x[h+1, w]
        a = xu + 2.0 * x + xd                      # vertical [1, 2, 1]
        b = xu - xd                                # vertical [1, 0, -1]
        a_l = m_left * pltpu.roll(a, 1, 1)         # a[h, w-1]
        a_r = m_right * pltpu.roll(a, L - 1, 1)    # a[h, w+1]
        b_l = m_left * pltpu.roll(b, 1, 1)
        b_r = m_right * pltpu.roll(b, L - 1, 1)
        gx = a_l - a_r                             # horizontal [1, 0, -1]
        gy = b_l + 2.0 * b + b_r                   # horizontal [1, 2, 1]
        return gx, gy

    gx1, gy1 = sobel_xy(x1_ref)
    gx2, gy2 = sobel_xy(x2_ref)
    gx1_ref[...] = gx1.astype(gx1_ref.dtype)
    gy1_ref[...] = gy1.astype(gy1_ref.dtype)
    gx2_ref[...] = gx2.astype(gx2_ref.dtype)
    gy2_ref[...] = gy2.astype(gy2_ref.dtype)


@jax.jit
def sobel_module_forward(f1, f2):
    """Pallas equivalent of SobelModule.forward: returns
    (sobel_x_f1, sobel_y_f1, sobel_x_f2, sobel_y_f2), all NCHW like the inputs."""
    assert f1.shape == f2.shape and f1.ndim == 4
    B, C, H, W = f1.shape
    P = B * C
    L = H * W

    # Free contiguous reshape to a lane-dense 2-D view: (planes, H*W).
    x1 = f1.reshape(P, L)
    x2 = f2.reshape(P, L)

    # Boundary masks (exact integer arithmetic; one tiny (4, L) array).
    flat = jnp.arange(L, dtype=jnp.int32)
    w_idx = flat % W
    masks = jnp.stack([
        (flat >= W).astype(jnp.float32),        # h > 0
        (flat < L - W).astype(jnp.float32),     # h < H-1
        (w_idx > 0).astype(jnp.float32),        # w > 0
        (w_idx < W - 1).astype(jnp.float32),    # w < W-1
    ], axis=0)                                   # (4, L)

    itemsize = jnp.dtype(f1.dtype).itemsize
    align = 8 if itemsize >= 4 else 16           # native sublane tile (f32 / bf16)

    cap = _vmem_capacity_bytes()
    budget = cap * 3 // 4                        # leave headroom below physical VMEM
    target_block_bytes = int(min(2 * 2**20, max(256 * 1024, budget // 40)))

    tp = _choose_plane_tile(P, L * itemsize, align, target_block_bytes)
    grid = (pl.cdiv(P, tp),)

    dma_block = tp * L * itemsize
    f32_block = tp * L * 4
    # 6 double-buffered DMA streams + in-kernel f32 temporaries + slack.
    vmem_est = 12 * dma_block + 12 * f32_block + 2 * 2**20
    vmem_limit = int(min(budget, max(32 * 2**20, vmem_est)))
    # TODO(synk): for very large planes (many MiB per 8-plane block) the H axis
    # should additionally be tiled with a 1-row halo; not needed for typical
    # LPDiff feature-map sizes.

    spec = pl.BlockSpec((tp, L), lambda i: (i, 0))
    mask_spec = pl.BlockSpec((4, L), lambda i: (0, 0))
    out_sd = jax.ShapeDtypeStruct((P, L), f1.dtype)

    gx1, gy1, gx2, gy2 = pl.pallas_call(
        functools.partial(_sobel_flat_kernel, W),
        out_shape=(out_sd, out_sd, out_sd, out_sd),
        grid=grid,
        in_specs=[mask_spec, spec, spec],
        out_specs=(spec, spec, spec, spec),
        compiler_params=pltpu.CompilerParams(
            dimension_semantics=("parallel",),
            vmem_limit_bytes=vmem_limit,
        ),
    )(masks, x1, x2)

    shape = (B, C, H, W)
    return (gx1.reshape(shape), gy1.reshape(shape),
            gx2.reshape(shape), gy2.reshape(shape))


def _reference_sobel(x):
    """Pure-JAX reference (explicit taps, zero padding) for validation."""
    B, C, H, W = x.shape
    xp = jnp.pad(x, ((0, 0), (0, 0), (1, 1), (1, 1)))
    tl = xp[:, :, 0:H,     0:W]
    tc = xp[:, :, 0:H,     1:W + 1]
    tr = xp[:, :, 0:H,     2:W + 2]
    ml = xp[:, :, 1:H + 1, 0:W]
    mr = xp[:, :, 1:H + 1, 2:W + 2]
    bl = xp[:, :, 2:H + 2, 0:W]
    bc = xp[:, :, 2:H + 2, 1:W + 1]
    br = xp[:, :, 2:H + 2, 2:W + 2]
    gx = (tl - tr) + 2.0 * (ml - mr) + (bl - br)
    gy = (tl + 2.0 * tc + tr) - (bl + 2.0 * bc + br)
    return gx, gy


if __name__ == "__main__":
    key = jax.random.PRNGKey(0)
    k1, k2 = jax.random.split(key)
    B, C, H, W = 2, 4, 16, 16
    f1 = jax.random.normal(k1, (B, C, H, W), dtype=jnp.float32)
    f2 = jax.random.normal(k2, (B, C, H, W), dtype=jnp.float32)

    outs = jax.block_until_ready(sobel_module_forward(f1, f2))
    sx1, sy1, sx2, sy2 = outs

    # Correctness check against the pure-JAX reference.
    rgx1, rgy1 = _reference_sobel(f1)
    rgx2, rgy2 = _reference_sobel(f2)
    for a, b in ((sx1, rgx1), (sy1, rgy1), (sx2, rgx2), (sy2, rgy2)):
        assert a.shape == (B, C, H, W)
        assert float(jnp.max(jnp.abs(a - b))) < 1e-4

    print("KERNEL_OK")
</pallas_src>

<mosaic_0001>
module attributes {stable_mosaic.version = 11 : i64} {
  func.func @_sobel_flat_kernel(%arg0: i32, %arg1: memref<4x256xf32, #tpu.memory_space<vmem>>, %arg2: memref<8x256xf32, #tpu.memory_space<vmem>>, %arg3: memref<8x256xf32, #tpu.memory_space<vmem>>, %arg4: memref<8x256xf32, #tpu.memory_space<vmem>>, %arg5: memref<8x256xf32, #tpu.memory_space<vmem>>, %arg6: memref<8x256xf32, #tpu.memory_space<vmem>>, %arg7: memref<8x256xf32, #tpu.memory_space<vmem>>) attributes {dimension_semantics = [#tpu.dimension_semantics<parallel>], iteration_bounds = array<i64: 1>, scalar_prefetch = 0 : i64, scratch_operands = 0 : i64, tpu.core_type = #tpu.core_type<tc>, window_params = [{pipeline_mode = #tpu.pipeline_mode<synchronous>, transform_indices = @transform_0, window_bounds = array<i64: 4, 256>}, {transform_indices = @transform_1, window_bounds = array<i64: 8, 256>}, {transform_indices = @transform_2, window_bounds = array<i64: 8, 256>}, {transform_indices = @transform_3, window_bounds = array<i64: 8, 256>}, {transform_indices = @transform_4, window_bounds = array<i64: 8, 256>}, {transform_indices = @transform_5, window_bounds = array<i64: 8, 256>}, {transform_indices = @transform_6, window_bounds = array<i64: 8, 256>}]} {
    %c0 = arith.constant 0 : index
    %c0_0 = arith.constant 0 : index
    %0 = vector.load %arg1[%c0, %c0_0] : memref<4x256xf32, #tpu.memory_space<vmem>>, vector<4x256xf32>
    %1 = vector.extract_strided_slice %0 {offsets = [0, 0], sizes = [1, 256], strides = [1, 1]} : vector<4x256xf32> to vector<1x256xf32>
    %2 = vector.extract_strided_slice %0 {offsets = [1, 0], sizes = [1, 256], strides = [1, 1]} : vector<4x256xf32> to vector<1x256xf32>
    %3 = vector.extract_strided_slice %0 {offsets = [2, 0], sizes = [1, 256], strides = [1, 1]} : vector<4x256xf32> to vector<1x256xf32>
    %4 = vector.extract_strided_slice %0 {offsets = [3, 0], sizes = [1, 256], strides = [1, 1]} : vector<4x256xf32> to vector<1x256xf32>
    %c0_1 = arith.constant 0 : index
    %c0_2 = arith.constant 0 : index
    %5 = vector.load %arg2[%c0_1, %c0_2] : memref<8x256xf32, #tpu.memory_space<vmem>>, vector<8x256xf32>
    %c16_i32 = arith.constant 16 : i32
    %6 = tpu.dynamic_rotate %5 by %c16_i32 dim 1 : vector<8x256xf32>, i32 -> vector<8x256xf32>
    %7 = vector.broadcast %1 : vector<1x256xf32> to vector<8x256xf32>
    %8 = arith.mulf %7, %6 : vector<8x256xf32>
    %c240_i32 = arith.constant 240 : i32
    %9 = tpu.dynamic_rotate %5 by %c240_i32 dim 1 : vector<8x256xf32>, i32 -> vector<8x256xf32>
    %10 = vector.broadcast %2 : vector<1x256xf32> to vector<8x256xf32>
    %11 = arith.mulf %10, %9 : vector<8x256xf32>
    %cst = arith.constant 2.000000e+00 : f32
    %12 = vector.broadcast %cst : f32 to vector<8x256xf32>
    %13 = arith.mulf %12, %5 : vector<8x256xf32>
    %14 = arith.addf %8, %13 : vector<8x256xf32>
    %15 = arith.addf %14, %11 : vector<8x256xf32>
    %16 = arith.subf %8, %11 : vector<8x256xf32>
    %c1_i32 = arith.constant 1 : i32
    %17 = tpu.dynamic_rotate %15 by %c1_i32 dim 1 : vector<8x256xf32>, i32 -> vector<8x256xf32>
    %18 = vector.broadcast %3 : vector<1x256xf32> to vector<8x256xf32>
    %19 = arith.mulf %18, %17 : vector<8x256xf32>
    %c255_i32 = arith.constant 255 : i32
    %20 = tpu.dynamic_rotate %15 by %c255_i32 dim 1 : vector<8x256xf32>, i32 -> vector<8x256xf32>
    %21 = vector.broadcast %4 : vector<1x256xf32> to vector<8x256xf32>
    %22 = arith.mulf %21, %20 : vector<8x256xf32>
    %c1_i32_3 = arith.constant 1 : i32
    %23 = tpu.dynamic_rotate %16 by %c1_i32_3 dim 1 : vector<8x256xf32>, i32 -> vector<8x256xf32>
    %24 = vector.broadcast %3 : vector<1x256xf32> to vector<8x256xf32>
    %25 = arith.mulf %24, %23 : vector<8x256xf32>
    %c255_i32_4 = arith.constant 255 : i32
    %26 = tpu.dynamic_rotate %16 by %c255_i32_4 dim 1 : vector<8x256xf32>, i32 -> vector<8x256xf32>
    %27 = vector.broadcast %4 : vector<1x256xf32> to vector<8x256xf32>
    %28 = arith.mulf %27, %26 : vector<8x256xf32>
    %29 = arith.subf %19, %22 : vector<8x256xf32>
    %cst_5 = arith.constant 2.000000e+00 : f32
    %30 = vector.broadcast %cst_5 : f32 to vector<8x256xf32>
    %31 = arith.mulf %30, %16 : vector<8x256xf32>
    %32 = arith.addf %25, %31 : vector<8x256xf32>
    %33 = arith.addf %32, %28 : vector<8x256xf32>
    %c0_6 = arith.constant 0 : index
    %c0_7 = arith.constant 0 : index
    %34 = vector.load %arg3[%c0_6, %c0_7] : memref<8x256xf32, #tpu.memory_space<vmem>>, vector<8x256xf32>
    %c16_i32_8 = arith.constant 16 : i32
    %35 = tpu.dynamic_rotate %34 by %c16_i32_8 dim 1 : vector<8x256xf32>, i32 -> vector<8x256xf32>
    %36 = vector.broadcast %1 : vector<1x256xf32> to vector<8x256xf32>
    %37 = arith.mulf %36, %35 : vector<8x256xf32>
    %c240_i32_9 = arith.constant 240 : i32
    %38 = tpu.dynamic_rotate %34 by %c240_i32_9 dim 1 : vector<8x256xf32>, i32 -> vector<8x256xf32>
    %39 = vector.broadcast %2 : vector<1x256xf32> to vector<8x256xf32>
    %40 = arith.mulf %39, %38 : vector<8x256xf32>
    %cst_10 = arith.constant 2.000000e+00 : f32
    %41 = vector.broadcast %cst_10 : f32 to vector<8x256xf32>
    %42 = arith.mulf %41, %34 : vector<8x256xf32>
    %43 = arith.addf %37, %42 : vector<8x256xf32>
    %44 = arith.addf %43, %40 : vector<8x256xf32>
    %45 = arith.subf %37, %40 : vector<8x256xf32>
    %c1_i32_11 = arith.constant 1 : i32
    %46 = tpu.dynamic_rotate %44 by %c1_i32_11 dim 1 : vector<8x256xf32>, i32 -> vector<8x256xf32>
    %47 = vector.broadcast %3 : vector<1x256xf32> to vector<8x256xf32>
    %48 = arith.mulf %47, %46 : vector<8x256xf32>
    %c255_i32_12 = arith.constant 255 : i32
    %49 = tpu.dynamic_rotate %44 by %c255_i32_12 dim 1 : vector<8x256xf32>, i32 -> vector<8x256xf32>
    %50 = vector.broadcast %4 : vector<1x256xf32> to vector<8x256xf32>
    %51 = arith.mulf %50, %49 : vector<8x256xf32>
    %c1_i32_13 = arith.constant 1 : i32
    %52 = tpu.dynamic_rotate %45 by %c1_i32_13 dim 1 : vector<8x256xf32>, i32 -> vector<8x256xf32>
    %53 = vector.broadcast %3 : vector<1x256xf32> to vector<8x256xf32>
    %54 = arith.mulf %53, %52 : vector<8x256xf32>
    %c255_i32_14 = arith.constant 255 : i32
    %55 = tpu.dynamic_rotate %45 by %c255_i32_14 dim 1 : vector<8x256xf32>, i32 -> vector<8x256xf32>
    %56 = vector.broadcast %4 : vector<1x256xf32> to vector<8x256xf32>
    %57 = arith.mulf %56, %55 : vector<8x256xf32>
    %58 = arith.subf %48, %51 : vector<8x256xf32>
    %cst_15 = arith.constant 2.000000e+00 : f32
    %59 = vector.broadcast %cst_15 : f32 to vector<8x256xf32>
    %60 = arith.mulf %59, %45 : vector<8x256xf32>
    %61 = arith.addf %54, %60 : vector<8x256xf32>
    %62 = arith.addf %61, %57 : vector<8x256xf32>
    %c0_16 = arith.constant 0 : index
    %c0_17 = arith.constant 0 : index
    %63 = vector.load %arg4[%c0_16, %c0_17] : memref<8x256xf32, #tpu.memory_space<vmem>>, vector<8x256xf32>
    tpu.vector_store %arg4[%c0_16, %c0_17], %29 {strides = array<i32>} : memref<8x256xf32, #tpu.memory_space<vmem>>, vector<8x256xf32>,
    %c0_18 = arith.constant 0 : index
    %c0_19 = arith.constant 0 : index
    %64 = vector.load %arg5[%c0_18, %c0_19] : memref<8x256xf32, #tpu.memory_space<vmem>>, vector<8x256xf32>
    tpu.vector_store %arg5[%c0_18, %c0_19], %33 {strides = array<i32>} : memref<8x256xf32, #tpu.memory_space<vmem>>, vector<8x256xf32>,
    %c0_20 = arith.constant 0 : index
    %c0_21 = arith.constant 0 : index
    %65 = vector.load %arg6[%c0_20, %c0_21] : memref<8x256xf32, #tpu.memory_space<vmem>>, vector<8x256xf32>
    tpu.vector_store %arg6[%c0_20, %c0_21], %58 {strides = array<i32>} : memref<8x256xf32, #tpu.memory_space<vmem>>, vector<8x256xf32>,
    %c0_22 = arith.constant 0 : index
    %c0_23 = arith.constant 0 : index
    %66 = vector.load %arg7[%c0_22, %c0_23] : memref<8x256xf32, #tpu.memory_space<vmem>>, vector<8x256xf32>
    tpu.vector_store %arg7[%c0_22, %c0_23], %62 {strides = array<i32>} : memref<8x256xf32, #tpu.memory_space<vmem>>, vector<8x256xf32>,
    return
  }
  func.func @transform_0(%arg0: i32) -> (i32, i32) {
    %c0_i32 = arith.constant 0 : i32
    %c0_i32_0 = arith.constant 0 : i32
    %c0_i32_1 = arith.constant 0 : i32
    return %c0_i32, %c0_i32_0 : i32, i32
  }
  func.func @transform_1(%arg0: i32) -> (i32, i32) {
    %c0_i32 = arith.constant 0 : i32
    %c0_i32_0 = arith.constant 0 : i32
    return %arg0, %c0_i32 : i32, i32
  }
  func.func @transform_2(%arg0: i32) -> (i32, i32) {
    %c0_i32 = arith.constant 0 : i32
    %c0_i32_0 = arith.constant 0 : i32
    return %arg0, %c0_i32 : i32, i32
  }
  func.func @transform_3(%arg0: i32) -> (i32, i32) {
    %c0_i32 = arith.constant 0 : i32
    %c0_i32_0 = arith.constant 0 : i32
    return %arg0, %c0_i32 : i32, i32
  }
  func.func @transform_4(%arg0: i32) -> (i32, i32) {
    %c0_i32 = arith.constant 0 : i32
    %c0_i32_0 = arith.constant 0 : i32
    return %arg0, %c0_i32 : i32, i32
  }
  func.func @transform_5(%arg0: i32) -> (i32, i32) {
    %c0_i32 = arith.constant 0 : i32
    %c0_i32_0 = arith.constant 0 : i32
    return %arg0, %c0_i32 : i32, i32
  }
  func.func @transform_6(%arg0: i32) -> (i32, i32) {
    %c0_i32 = arith.constant 0 : i32
    %c0_i32_0 = arith.constant 0 : i32
    return %arg0, %c0_i32 : i32, i32
  }
}

</mosaic_0001>

<llo_original>
// kernel: sobel_module_forward.1
$region0: #{sobel_module_forward.1}
  #allocation0 [shape = 'u32[]', space=smem, size = 0x4, offset = 0x4, fixed_abs, tag = 'smem constant byte address 0x4 - core index']
  #allocation1 [shape = 'u32[72,128]{1,0:T(1,128)}', space=vmem, size = 0x9000, scoped, tag = 'internal scratch']
  %s0 = inlined_call_operand.vmem [shape: f32[4,256], index: 0, kind: input, shape index: {}]
  %s1 = inlined_call_operand.vmem [shape: f32[8,256], index: 1, kind: input, shape index: {}]
  %s2 = inlined_call_operand.vmem [shape: f32[8,256], index: 2, kind: input, shape index: {}]
  %s3 = inlined_call_operand.vmem [shape: f32[8,256], index: 3, kind: output, shape index: {0}]
  %s4 = inlined_call_operand.vmem [shape: f32[8,256], index: 4, kind: output, shape index: {1}]
  %s5 = inlined_call_operand.vmem [shape: f32[8,256], index: 5, kind: output, shape index: {2}]
  %s6 = inlined_call_operand.vmem [shape: f32[8,256], index: 6, kind: output, shape index: {3}]
  %7 = xla_tuple %s3, %s4, %s5, %s6
  %s8 = sld [smem:[#allocation0]]
  $region46: #{sobel_module_forward.1} parent=0
    _
  %s10 = ssub.s32 1, %s8
  %s11 = scalar_select 0, %s10, %s8
  // Predicated region
  $region2: #{sobel_module_forward.1} parent=0 // pred_check
    _
  $region3: #{sobel_module_forward.1} parent=0 // pred_check_branch
    %13 = sbr.rel (0) target = $region5
  $region4: #{sobel_module_forward.1} parent=0 // pred_region
    _
  $region5: #{sobel_module_forward.1} parent=0 // pred_fallthru
    _
  // Predicated region
  $region6: #{sobel_module_forward.1} parent=0 // pred_check
    _
  $region7: #{sobel_module_forward.1} parent=0 // pred_check_branch
    %15 = sbr.rel (0) target = $region9
  $region8: #{sobel_module_forward.1} parent=0 // pred_region
    _
  $region9: #{sobel_module_forward.1} parent=0 // pred_fallthru
    _
  // Predicated region
  $region10: #{sobel_module_forward.1} parent=0 // pred_check
    _
  $region11: #{sobel_module_forward.1} parent=0 // pred_check_branch
    %17 = sbr.rel (0) target = $region13
  $region12: #{sobel_module_forward.1} parent=0 // pred_region
    _
  $region13: #{sobel_module_forward.1} parent=0 // pred_fallthru
    _
  %v18 = vld [vmem:[%s0] sm:$0xff]
  %v19 = vld [vmem:[%s1] sm:$0xff]
  %v20 = vld [vmem:[%s1 + $0x8] sm:$0xff]
  %21 = vrot.lane.b32.xlu0 %v19, 16
  %v22 = vpop.permute.xlu0 %21
  %23 = vrot.lane.b32.xlu0 %v20, 16
  %v24 = vpop.permute.xlu0 %23
  %v25 = vlaneseq
  %v26 = vand.u32 %v25, 127
  %vm27 = vcmp.lt.s32.totalorder %v26, 16
  %v28 = vsel %vm27, %v22, %v24
  %v29 = vsel %vm27, %v24, %v22
  %v31 = vperm.slane %v18, 0
  %v32 = vperm.slane %v18, 4
  %v35 = vperm.slane %v31, 0
  %v36 = vperm.slane %v32, 0
  %v37 = vmul.f32 %v35, %v29
  %v38 = vmul.f32 %v36, %v28
  %39 = vrot.lane.b32.xlu0 %v19, 112
  %v40 = vpop.permute.xlu0 %39
  %41 = vrot.lane.b32.xlu0 %v20, 112
  %v42 = vpop.permute.xlu0 %41
  %vm43 = vcmp.lt.s32.totalorder %v26, 112
  %v44 = vsel %vm43, %v40, %v42
  %v45 = vsel %vm43, %v42, %v40
  %v46 = vperm.slane %v18, 1
  %v47 = vperm.slane %v18, 5
  %v50 = vperm.slane %v46, 1
  %v51 = vperm.slane %v47, 1
  %v52 = vmul.f32 %v50, %v44
  %v53 = vmul.f32 %v51, %v45
  %v54 = vmul.f32 %v19, 2.0
  %v55 = vmul.f32 %v20, 2.0
  %v56 = vadd.f32 %v37, %v54
  %v57 = vadd.f32 %v38, %v55
  %v58 = vadd.f32 %v56, %v52
  %v59 = vadd.f32 %v57, %v53
  %v60 = vsub.f32 %v37, %v52
  %v61 = vsub.f32 %v38, %v53
  %62 = vrot.lane.b32.xlu0 %v58, 1
  %v63 = vpop.permute.xlu0 %62
  %64 = vrot.lane.b32.xlu0 %v59, 1
  %v65 = vpop.permute.xlu0 %64
  %vm66 = vcmp.lt.s32.totalorder %v26, 1
  %v67 = vsel %vm66, %v63, %v65
  %v68 = vsel %vm66, %v65, %v63
  %v69 = vperm.slane %v18, 2
  %v70 = vperm.slane %v18, 6
  %v73 = vperm.slane %v69, 2
  %v74 = vperm.slane %v70, 2
  %v75 = vmul.f32 %v73, %v68
  %v76 = vmul.f32 %v74, %v67
  %77 = vrot.lane.b32.xlu0 %v58, 127
  %v78 = vpop.permute.xlu0 %77
  %79 = vrot.lane.b32.xlu0 %v59, 127
  %v80 = vpop.permute.xlu0 %79
  %vm81 = vcmp.lt.s32.totalorder %v26, 127
  %v82 = vsel %vm81, %v78, %v80
  %v83 = vsel %vm81, %v80, %v78
  %v84 = vperm.slane %v18, 3
  %v85 = vperm.slane %v18, 7
  %v88 = vperm.slane %v84, 3
  %v89 = vperm.slane %v85, 3
  %v90 = vmul.f32 %v88, %v82
  %v91 = vmul.f32 %v89, %v83
  %92 = vrot.lane.b32.xlu0 %v60, 1
  %v93 = vpop.permute.xlu0 %92
  %94 = vrot.lane.b32.xlu0 %v61, 1
  %v95 = vpop.permute.xlu0 %94
  %v96 = vsel %vm66, %v93, %v95
  %v97 = vsel %vm66, %v95, %v93
  %v98 = vmul.f32 %v73, %v97
  %v99 = vmul.f32 %v74, %v96
  %100 = vrot.lane.b32.xlu0 %v60, 127
  %v101 = vpop.permute.xlu0 %100
  %102 = vrot.lane.b32.xlu0 %v61, 127
  %v103 = vpop.permute.xlu0 %102
  %v104 = vsel %vm81, %v101, %v103
  %v105 = vsel %vm81, %v103, %v101
  %v106 = vmul.f32 %v88, %v104
  %v107 = vmul.f32 %v89, %v105
  %v108 = vsub.f32 %v75, %v90
  %v109 = vsub.f32 %v76, %v91
  %v110 = vmul.f32 %v60, 2.0
  %v111 = vmul.f32 %v61, 2.0
  %v112 = vadd.f32 %v98, %v110
  %v113 = vadd.f32 %v99, %v111
  %v114 = vadd.f32 %v112, %v106
  %v115 = vadd.f32 %v113, %v107
  %v116 = vld [vmem:[%s2] sm:$0xff]
  %v117 = vld [vmem:[%s2 + $0x8] sm:$0xff]
  %118 = vrot.lane.b32.xlu0 %v116, 16
  %v119 = vpop.permute.xlu0 %118
  %120 = vrot.lane.b32.xlu0 %v117, 16
  %v121 = vpop.permute.xlu0 %120
  %v122 = vsel %vm27, %v119, %v121
  %v123 = vsel %vm27, %v121, %v119
  %v124 = vmul.f32 %v35, %v123
  %v125 = vmul.f32 %v36, %v122
  %126 = vrot.lane.b32.xlu0 %v116, 112
  %v127 = vpop.permute.xlu0 %126
  %128 = vrot.lane.b32.xlu0 %v117, 112
  %v129 = vpop.permute.xlu0 %128
  %v130 = vsel %vm43, %v127, %v129
  %v131 = vsel %vm43, %v129, %v127
  %v132 = vmul.f32 %v50, %v130
  %v133 = vmul.f32 %v51, %v131
  %v134 = vmul.f32 %v116, 2.0
  %v135 = vmul.f32 %v117, 2.0
  %v136 = vadd.f32 %v124, %v134
  %v137 = vadd.f32 %v125, %v135
  %v138 = vadd.f32 %v136, %v132
  %v139 = vadd.f32 %v137, %v133
  %v140 = vsub.f32 %v124, %v132
  %v141 = vsub.f32 %v125, %v133
  %142 = vrot.lane.b32.xlu0 %v138, 1
  %v143 = vpop.permute.xlu0 %142
  %144 = vrot.lane.b32.xlu0 %v139, 1
  %v145 = vpop.permute.xlu0 %144
  %v146 = vsel %vm66, %v143, %v145
  %v147 = vsel %vm66, %v145, %v143
  %v148 = vmul.f32 %v73, %v147
  %v149 = vmul.f32 %v74, %v146
  %150 = vrot.lane.b32.xlu0 %v138, 127
  %v151 = vpop.permute.xlu0 %150
  %152 = vrot.lane.b32.xlu0 %v139, 127
  %v153 = vpop.permute.xlu0 %152
  %v154 = vsel %vm81, %v151, %v153
  %v155 = vsel %vm81, %v153, %v151
  %v156 = vmul.f32 %v88, %v154
  %v157 = vmul.f32 %v89, %v155
  %158 = vrot.lane.b32.xlu0 %v140, 1
  %v159 = vpop.permute.xlu0 %158
  %160 = vrot.lane.b32.xlu0 %v141, 1
  %v161 = vpop.permute.xlu0 %160
  %v162 = vsel %vm66, %v159, %v161
  %v163 = vsel %vm66, %v161, %v159
  %v164 = vmul.f32 %v73, %v163
  %v165 = vmul.f32 %v74, %v162
  %166 = vrot.lane.b32.xlu0 %v140, 127
  %v167 = vpop.permute.xlu0 %166
  %168 = vrot.lane.b32.xlu0 %v141, 127
  %v169 = vpop.permute.xlu0 %168
  %v170 = vsel %vm81, %v167, %v169
  %v171 = vsel %vm81, %v169, %v167
  %v172 = vmul.f32 %v88, %v170
  %v173 = vmul.f32 %v89, %v171
  %v174 = vsub.f32 %v148, %v156
  %v175 = vsub.f32 %v149, %v157
  %v176 = vmul.f32 %v140, 2.0
  %v177 = vmul.f32 %v141, 2.0
  %v178 = vadd.f32 %v164, %v176
  %v179 = vadd.f32 %v165, %v177
  %v180 = vadd.f32 %v178, %v172
  %v181 = vadd.f32 %v179, %v173
  %182 = vst [vmem:[%s3] sm:$0xff] %v108
  %183 = vst [vmem:[%s3 + $0x8] sm:$0xff] %v109
  %184 = vst [vmem:[%s4] sm:$0xff] %v114
  %185 = vst [vmem:[%s4 + $0x8] sm:$0xff] %v115
  %186 = vst [vmem:[%s5] sm:$0xff] %v174
  %187 = vst [vmem:[%s5 + $0x8] sm:$0xff] %v175
  %188 = vst [vmem:[%s6] sm:$0xff] %v180
  %189 = vst [vmem:[%s6 + $0x8] sm:$0xff] %v181
  // Predicated region
  $region14: #{sobel_module_forward.1} parent=0 // pred_check
    _
  $region15: #{sobel_module_forward.1} parent=0 // pred_check_branch
    %191 = sbr.rel (0) target = $region17
  $region16: #{sobel_module_forward.1} parent=0 // pred_region
    _
  $region17: #{sobel_module_forward.1} parent=0 // pred_fallthru
    _
  // Predicated region
  $region18: #{sobel_module_forward.1} parent=0 // pred_check
    _
  $region19: #{sobel_module_forward.1} parent=0 // pred_check_branch
    %193 = sbr.rel (0) target = $region21
  $region20: #{sobel_module_forward.1} parent=0 // pred_region
    _
  $region21: #{sobel_module_forward.1} parent=0 // pred_fallthru
    _
  // Predicated region
  $region22: #{sobel_module_forward.1} parent=0 // pred_check
    _
  $region23: #{sobel_module_forward.1} parent=0 // pred_check_branch
    %195 = sbr.rel (0) target = $region25
  $region24: #{sobel_module_forward.1} parent=0 // pred_region
    _
  $region25: #{sobel_module_forward.1} parent=0 // pred_fallthru
    _
  // Predicated region
  $region26: #{sobel_module_forward.1} parent=0 // pred_check
    _
  $region27: #{sobel_module_forward.1} parent=0 // pred_check_branch
    %197 = sbr.rel (0) target = $region29
  $region28: #{sobel_module_forward.1} parent=0 // pred_region
    _
  $region29: #{sobel_module_forward.1} parent=0 // pred_fallthru
    _
  // Predicated region
  $region30: #{sobel_module_forward.1} parent=0 // pred_check
    _
  $region31: #{sobel_module_forward.1} parent=0 // pred_check_branch
    %199 = sbr.rel (0) target = $region33
  $region32: #{sobel_module_forward.1} parent=0 // pred_region
    _
  $region33: #{sobel_module_forward.1} parent=0 // pred_fallthru
    _
  // Predicated region
  $region34: #{sobel_module_forward.1} parent=0 // pred_check
    _
  $region35: #{sobel_module_forward.1} parent=0 // pred_check_branch
    %201 = sbr.rel (0) target = $region37
  $region36: #{sobel_module_forward.1} parent=0 // pred_region
    _
  $region37: #{sobel_module_forward.1} parent=0 // pred_fallthru
    _
  // Predicated region
  $region38: #{sobel_module_forward.1} parent=0 // pred_check
    _
  $region39: #{sobel_module_forward.1} parent=0 // pred_check_branch
    %203 = sbr.rel (0) target = $region41
  $region40: #{sobel_module_forward.1} parent=0 // pred_region
    _
  $region41: #{sobel_module_forward.1} parent=0 // pred_fallthru
    _
  // Predicated region
  $region42: #{sobel_module_forward.1} parent=0 // pred_check
    _
  $region43: #{sobel_module_forward.1} parent=0 // pred_check_branch
    %205 = sbr.rel (0) target = $region45
  $region44: #{sobel_module_forward.1} parent=0 // pred_region
    _
  $region45: #{sobel_module_forward.1} parent=0 // pred_fallthru
    _

</llo_original>
